<compile_context>
chip_gen: v7x
topology: tpu7x:2x2x1
jax: 0.10.0
libtpu: 0.0.40
codegen_flags: <defaults>
</compile_context>

<pallas_src>
import jax
import jax.numpy as jnp
from jax import lax
from jax.experimental import pallas as pl
from jax.experimental.pallas import tpu as pltpu


def skipgram_loss_kernel(c_ref, o_ref, w_ref, cnt_ref, loss_ref, acc_ref):
    # c_ref, o_ref : (B, E)   center / outside embedding rows (resident)
    # w_ref        : (TV, E)  vocab tile of embedding_outside table
    # cnt_ref      : (B, TV)  f32 multiplicity of each vocab row in all_vocabs
    # loss_ref     : (1, 1)   f32 output (written on last step only)
    # acc_ref      : (B, TV)  f32 scratch, accumulates cnt * exp(scores)
    j = pl.program_id(0)

    @pl.when(j == 0)
    def _init():
        acc_ref[...] = jnp.zeros_like(acc_ref)

    # MXU: (B, E) x (TV, E)^T -> (B, TV), f32 accumulation.
    scores = lax.dot_general(
        c_ref[...], w_ref[...],
        dimension_numbers=(((1,), (1,)), ((), ())),
        preferred_element_type=jnp.float32)
    acc_ref[...] += cnt_ref[...] * jnp.exp(scores)

    @pl.when(j == pl.num_programs(0) - 1)
    def _finish():
        c = c_ref[...].astype(jnp.float32)
        o = o_ref[...].astype(jnp.float32)
        top_logit = jnp.sum(o * c, axis=-1, keepdims=True)           # (B, 1)
        lower_sum = jnp.sum(acc_ref[...], axis=-1, keepdims=True)    # (B, 1)
        b = top_logit.shape[0]
        # loss = mean_b log(lower_sum_b) - mean_b top_logit_b
        loss_ref[...] = (jnp.sum(jnp.log(lower_sum), keepdims=True)
                         - jnp.sum(top_logit, keepdims=True)) / float(b)


def skipgram_loss(emb_center, emb_outside, center, outside, all_vocabs, *,
                  tv=128):
    """Forward pass of Skipgram. Returns scalar f32 loss.

    emb_center / emb_outside : (voc, E) f32 or bf16
    center / outside         : (B, 1) int32
    all_vocabs               : (B, V) int32
    tv: vocab tile (multiple of 128). For large vocab raise it, budgeting
        2*tv*E*itemsize (double-buffered) + B*tv*4 against per-generation
        VMEM (v7x scoped default 32 MiB / 64 MiB physical).
    """
    voc, E = emb_outside.shape
    B = center.shape[0]

    # Tiny glue gathers: B rows of each table (nn.Embedding == row gather).
    # TODO(synk): for huge tables these could be streamed in-kernel via
    # scalar-prefetched index maps; negligible here.
    c = jnp.take(emb_center, center[:, 0], axis=0)      # (B, E)
    o = jnp.take(emb_outside, outside[:, 0], axis=0)    # (B, E)

    # Pad vocab to a multiple of the tile; padded rows get count 0.
    vp = pl.cdiv(voc, tv) * tv
    w = emb_outside
    if vp != voc:
        w = jnp.pad(w, ((0, vp - voc), (0, 0)))
    cnt = jnp.zeros((B, vp), jnp.float32).at[
        jnp.arange(B)[:, None], all_vocabs].add(1.0)    # (B, vp)

    itemsize = jnp.dtype(w.dtype).itemsize
    cost = pl.CostEstimate(
        flops=2 * B * vp * E,
        transcendentals=B * vp,
        bytes_accessed=vp * E * itemsize + B * vp * 4 + 2 * B * E * itemsize + 4)

    loss = pl.pallas_call(
        skipgram_loss_kernel,
        out_shape=jax.ShapeDtypeStruct((1, 1), jnp.float32),
        grid_spec=pltpu.PrefetchScalarGridSpec(
            num_scalar_prefetch=0,
            grid=(vp // tv,),
            in_specs=[
                pl.BlockSpec((B, E), lambda j: (0, 0)),    # center rows
                pl.BlockSpec((B, E), lambda j: (0, 0)),    # outside rows
                pl.BlockSpec((tv, E), lambda j: (j, 0)),   # vocab tile
                pl.BlockSpec((B, tv), lambda j: (0, j)),   # counts tile
            ],
            out_specs=pl.BlockSpec((1, 1), lambda j: (0, 0)),
            scratch_shapes=[pltpu.VMEM((B, tv), jnp.float32)]),
        compiler_params=pltpu.CompilerParams(
            dimension_semantics=("arbitrary",)),   # vocab axis is a reduction
        cost_estimate=cost,
    )(c, o, w, cnt)
    return loss[0, 0]


def skipgram_loss_ref(emb_center, emb_outside, center, outside, all_vocabs):
    """Pure-JAX reference mirroring the PyTorch code line-by-line."""
    ce = jnp.take(emb_center, center, axis=0)              # (B, 1, E)
    oe = jnp.take(emb_outside, outside, axis=0)            # (B, 1, E)
    ae = jnp.take(emb_outside, all_vocabs, axis=0)         # (B, V, E)
    top = jnp.exp(jnp.einsum('bie,bje->bij', oe, ce)[:, :, 0])   # (B, 1)
    lower = jnp.einsum('bve,bje->bvj', ae, ce)[:, :, 0]          # (B, V)
    lower_sum = jnp.sum(jnp.exp(lower), axis=1)                  # (B,)
    return -jnp.mean(jnp.log(top / lower_sum))    # (B,1)/(B,) -> (B,B) mean


if __name__ == "__main__":
    voc_size, emb_size, batch = 384, 32, 8

    key = jax.random.PRNGKey(0)
    k1, k2, k3, k4 = jax.random.split(key, 4)

    emb_center = 0.1 * jax.random.normal(k1, (voc_size, emb_size), jnp.float32)
    emb_outside = 0.1 * jax.random.normal(k2, (voc_size, emb_size), jnp.float32)

    center = jax.random.randint(k3, (batch, 1), 0, voc_size, dtype=jnp.int32)
    outside = jax.random.randint(k4, (batch, 1), 0, voc_size, dtype=jnp.int32)
    all_vocabs = jnp.broadcast_to(
        jnp.arange(voc_size, dtype=jnp.int32), (batch, voc_size))

    # f32 path: bit-level parity (up to summation order) with the reference.
    loss = skipgram_loss(emb_center, emb_outside, center, outside, all_vocabs)
    jax.block_until_ready(loss)

    ref = skipgram_loss_ref(emb_center, emb_outside, center, outside, all_vocabs)
    assert jnp.allclose(loss, ref, rtol=1e-5, atol=1e-5), (loss, ref)

    # bf16 embedding streams (v6e/v7x recommendation): same kernel, f32 accum.
    loss_bf16 = skipgram_loss(emb_center.astype(jnp.bfloat16),
                              emb_outside.astype(jnp.bfloat16),
                              center, outside, all_vocabs)
    jax.block_until_ready(loss_bf16)
    assert jnp.allclose(loss_bf16, ref, rtol=2e-2, atol=2e-2), (loss_bf16, ref)

    print("KERNEL_OK")
</pallas_src>

<mosaic_0001>
module attributes {stable_mosaic.version = 11 : i64} {
  func.func @skipgram_loss_kernel(%arg0: i32, %arg1: memref<8x32xf32, #tpu.memory_space<vmem>>, %arg2: memref<8x32xf32, #tpu.memory_space<vmem>>, %arg3: memref<128x32xf32, #tpu.memory_space<vmem>>, %arg4: memref<8x128xf32, #tpu.memory_space<vmem>>, %arg5: memref<1x1xf32, #tpu.memory_space<vmem>>, %arg6: memref<8x128xf32, #tpu.memory_space<vmem>>) attributes {dimension_semantics = [#tpu.dimension_semantics<arbitrary>], iteration_bounds = array<i64: 3>, scalar_prefetch = 0 : i64, scratch_operands = 1 : i64, tpu.core_type = #tpu.core_type<tc>, window_params = [{pipeline_mode = #tpu.pipeline_mode<synchronous>, transform_indices = @transform_0, window_bounds = array<i64: 8, 32>}, {pipeline_mode = #tpu.pipeline_mode<synchronous>, transform_indices = @transform_1, window_bounds = array<i64: 8, 32>}, {transform_indices = @transform_2, window_bounds = array<i64: 128, 32>}, {transform_indices = @transform_3, window_bounds = array<i64: 8, 128>}, {pipeline_mode = #tpu.pipeline_mode<synchronous>, transform_indices = @transform_4, window_bounds = array<i64: 1, 1>}]} {
    %c0_i32 = arith.constant 0 : i32
    %0 = arith.cmpi eq, %arg0, %c0_i32 : i32
    %1 = arith.extui %0 : i1 to i32
    %c0_i32_0 = arith.constant 0 : i32
    %2 = arith.cmpi ne, %1, %c0_i32_0 : i32
    scf.if %2 {
      %cst_11 = arith.constant 0.000000e+00 : f32
      %15 = vector.broadcast %cst_11 : f32 to vector<8x128xf32>
      %c0_12 = arith.constant 0 : index
      %c0_13 = arith.constant 0 : index
      %16 = vector.load %arg6[%c0_12, %c0_13] : memref<8x128xf32, #tpu.memory_space<vmem>>, vector<8x128xf32>
      tpu.vector_store %arg6[%c0_12, %c0_13], %15 {strides = array<i32>} : memref<8x128xf32, #tpu.memory_space<vmem>>, vector<8x128xf32>,
    } else {
    }
    %c0 = arith.constant 0 : index
    %c0_1 = arith.constant 0 : index
    %3 = vector.load %arg1[%c0, %c0_1] : memref<8x32xf32, #tpu.memory_space<vmem>>, vector<8x32xf32>
    %c0_2 = arith.constant 0 : index
    %c0_3 = arith.constant 0 : index
    %4 = vector.load %arg3[%c0_2, %c0_3] : memref<128x32xf32, #tpu.memory_space<vmem>>, vector<128x32xf32>
    %cst = arith.constant dense<0.000000e+00> : vector<8x128xf32>
    %5 = tpu.matmul %3, %4, %cst {dimension_numbers = #tpu.dot_dimension_numbers<[1], [1], [0], [0], [0, 0, 1, 0], [], []>} : vector<8x32xf32>, vector<128x32xf32>, vector<8x128xf32> -> vector<8x128xf32>
    %c0_4 = arith.constant 0 : index
    %c0_5 = arith.constant 0 : index
    %6 = vector.load %arg6[%c0_4, %c0_5] : memref<8x128xf32, #tpu.memory_space<vmem>>, vector<8x128xf32>
    %c0_6 = arith.constant 0 : index
    %c0_7 = arith.constant 0 : index
    %7 = vector.load %arg4[%c0_6, %c0_7] : memref<8x128xf32, #tpu.memory_space<vmem>>, vector<8x128xf32>
    %8 = math.exp %5 : vector<8x128xf32>
    %9 = arith.mulf %7, %8 : vector<8x128xf32>
    %10 = arith.addf %6, %9 : vector<8x128xf32>
    %c0_8 = arith.constant 0 : index
    %c0_9 = arith.constant 0 : index
    %11 = vector.load %arg6[%c0_8, %c0_9] : memref<8x128xf32, #tpu.memory_space<vmem>>, vector<8x128xf32>
    tpu.vector_store %arg6[%c0_8, %c0_9], %10 {strides = array<i32>} : memref<8x128xf32, #tpu.memory_space<vmem>>, vector<8x128xf32>,
    %c2_i32 = arith.constant 2 : i32
    %12 = arith.cmpi eq, %arg0, %c2_i32 : i32
    %13 = arith.extui %12 : i1 to i32
    %c0_i32_10 = arith.constant 0 : i32
    %14 = arith.cmpi ne, %13, %c0_i32_10 : i32
    scf.if %14 {
      %c0_11 = arith.constant 0 : index
      %c0_12 = arith.constant 0 : index
      %15 = vector.load %arg1[%c0_11, %c0_12] : memref<8x32xf32, #tpu.memory_space<vmem>>, vector<8x32xf32>
      %c0_13 = arith.constant 0 : index
      %c0_14 = arith.constant 0 : index
      %16 = vector.load %arg2[%c0_13, %c0_14] : memref<8x32xf32, #tpu.memory_space<vmem>>, vector<8x32xf32>
      %17 = arith.mulf %16, %15 : vector<8x32xf32>
      %cst_15 = arith.constant dense<0.000000e+00> : vector<8xf32>
      %18 = vector.multi_reduction <add>, %17, %cst_15 [1] : vector<8x32xf32> to vector<8xf32>
      %19 = vector.shape_cast %18 : vector<8xf32> to vector<8x1xf32>
      %c0_16 = arith.constant 0 : index
      %c0_17 = arith.constant 0 : index
      %20 = vector.load %arg6[%c0_16, %c0_17] : memref<8x128xf32, #tpu.memory_space<vmem>>, vector<8x128xf32>
      %cst_18 = arith.constant dense<0.000000e+00> : vector<8xf32>
      %21 = vector.multi_reduction <add>, %20, %cst_18 [1] : vector<8x128xf32> to vector<8xf32>
      %22 = vector.shape_cast %21 : vector<8xf32> to vector<8x1xf32>
      %23 = math.log %22 : vector<8x1xf32>
      %24 = vector.shape_cast %23 : vector<8x1xf32> to vector<1x8x1xf32>
      %cst_19 = arith.constant dense<0.000000e+00> : vector<1xf32>
      %25 = vector.multi_reduction <add>, %24, %cst_19 [1, 2] : vector<1x8x1xf32> to vector<1xf32>
      %26 = vector.shape_cast %25 : vector<1xf32> to vector<1x1x1xf32>
      %27 = vector.extract %26[0, 0, 0] : f32 from vector<1x1x1xf32>
      %28 = vector.broadcast %27 : f32 to vector<1x1xf32>
      %29 = vector.shape_cast %19 : vector<8x1xf32> to vector<1x8x1xf32>
      %cst_20 = arith.constant dense<0.000000e+00> : vector<1xf32>
      %30 = vector.multi_reduction <add>, %29, %cst_20 [1, 2] : vector<1x8x1xf32> to vector<1xf32>
      %31 = vector.shape_cast %30 : vector<1xf32> to vector<1x1x1xf32>
      %32 = vector.extract %31[0, 0, 0] : f32 from vector<1x1x1xf32>
      %33 = vector.broadcast %32 : f32 to vector<1x1xf32>
      %34 = arith.subf %28, %33 : vector<1x1xf32>
      %cst_21 = arith.constant 8.000000e+00 : f32
      %35 = vector.broadcast %cst_21 : f32 to vector<1x1xf32>
      %36 = arith.divf %34, %35 : vector<1x1xf32>
      %c0_22 = arith.constant 0 : index
      %c0_23 = arith.constant 0 : index
      %37 = vector.load %arg5[%c0_22, %c0_23] : memref<1x1xf32, #tpu.memory_space<vmem>>, vector<1x1xf32>
      tpu.vector_store %arg5[%c0_22, %c0_23], %36 {strides = array<i32>} : memref<1x1xf32, #tpu.memory_space<vmem>>, vector<1x1xf32>,
    } else {
    }
    return
  }
  func.func @transform_0(%arg0: i32) -> (i32, i32) {
    %c0_i32 = arith.constant 0 : i32
    %c0_i32_0 = arith.constant 0 : i32
    %c0_i32_1 = arith.constant 0 : i32
    return %c0_i32, %c0_i32_0 : i32, i32
  }
  func.func @transform_1(%arg0: i32) -> (i32, i32) {
    %c0_i32 = arith.constant 0 : i32
    %c0_i32_0 = arith.constant 0 : i32
    %c0_i32_1 = arith.constant 0 : i32
    return %c0_i32, %c0_i32_0 : i32, i32
  }
  func.func @transform_2(%arg0: i32) -> (i32, i32) {
    %c0_i32 = arith.constant 0 : i32
    %c0_i32_0 = arith.constant 0 : i32
    return %arg0, %c0_i32 : i32, i32
  }
  func.func @transform_3(%arg0: i32) -> (i32, i32) {
    %c0_i32 = arith.constant 0 : i32
    %c0_i32_0 = arith.constant 0 : i32
    return %c0_i32, %arg0 : i32, i32
  }
  func.func @transform_4(%arg0: i32) -> (i32, i32) {
    %c0_i32 = arith.constant 0 : i32
    %c0_i32_0 = arith.constant 0 : i32
    %c0_i32_1 = arith.constant 0 : i32
    return %c0_i32, %c0_i32_0 : i32, i32
  }
}

</mosaic_0001>

<llo_original>
// kernel: tpu_custom_call.1
$region0: #{tpu_custom_call.1}
  #allocation0 [shape = 'u32[]', space=smem, size = 0x4, offset = 0x4, fixed_abs, tag = 'smem constant byte address 0x4 - core index']
  #allocation1 [shape = 'u32[144,128]{1,0:T(1,128)}', space=vmem, size = 0x12000, scoped, tag = 'internal scratch']
  #allocation2 [shape = 'f32[8,128]{1,0:T(8,128)}', space=vmem, size = 0x1000, scoped, tag = 'scratch operand']
  %s0 = inlined_call_operand.vmem [shape: f32[8,32], index: 0, kind: input, shape index: {}]
  %s1 = inlined_call_operand.vmem [shape: f32[8,32], index: 1, kind: input, shape index: {}]
  %s2 = inlined_call_operand.vmem [shape: f32[384,32], index: 2, kind: input, shape index: {}]
  %s3 = inlined_call_operand.vmem [shape: f32[8,384], index: 3, kind: input, shape index: {}]
  %s4 = inlined_call_operand.hbm [shape: f32[1,1], index: 4, kind: output, shape index: {}]
  %s5 = sld [smem:[#allocation0]]
  $region57: #{tpu_custom_call.1} parent=0
    _
  %s7 = ssub.s32 1, %s5
  %s8 = scalar_select 0, %s7, %s5
  $region1: #{tpu_custom_call.1} parent=0
    #allocation3 [shape = 'u8[512]{0}', space=vmem, size = 0x400, scoped, tag = 'output window, operand 0, single buffered']
    #allocation4 [shape = 's32[2]{0}', space=sflag, size = 0x8, scoped, tag = 'scoped memory for tpu_custom_call.1']
    %9 = vsyncpa [#allocation4], 0
    loop: start=0, step=1, limit=5
    $region2: #{tpu_custom_call.1} parent=1 // loop_pre_header
      _
    $region3: #{tpu_custom_call.1} parent=1 // loop_header
      %s11 = sphi 0, %s15
      %p12 = scmp.ge.s32.totalorder %s11, 5
      %s19 = sphi 0, %s19
      %s21 = sphi 0, %s19
      %s22 = sphi 0, %s21
      %s36 = sphi 0, %s22
      %s40 = sphi 0, %s40
      %s42 = sphi 0, %s40
      %s43 = sphi 0, %s42
      %s57 = sphi 0, %s43
      %s63 = sphi 0, %s65
      %s66 = sphi 0, %s63
      %s67 = sphi 0, %s66
      %s83 = sphi 0, %s67
      %s89 = sphi 0, %s91
      %s92 = sphi 0, %s89
      %s93 = sphi 0, %s92
      %s109 = sphi 0, %s93
      %s113 = sphi 0, %s113
      %s115 = sphi 0, %s113
      %s116 = sphi 0, %s115
      %s130 = sphi 0, %s116
    $region4: #{tpu_custom_call.1} parent=1 // loop_header_branch
      %14 = sbr.rel (%p12) target = $region8
    $region5: #{tpu_custom_call.1} parent=1 // loop_body
      %s16 = ssub.s32 %s11, 1
      %s17 = ssub.s32 %s11, 2
      %s18 = sadd.s32 %s11, 1
      %s20 = sadd.s32 %s19, 1
      %p23 = scmp.eq.s32.totalorder %s11, 2
      %p24 = scmp.ne.s32.totalorder %s19, %s21
      %p25 = scmp.eq.s32.totalorder %s11, 0
      %p26 = por %p24, %p25
      %p27 = scmp.ne.s32.totalorder %s19, %s21
      %p28 = scmp.eq.s32.totalorder %s16, 2
      %p29 = por %p27, %p28
      %p30 = scmp.ne.s32.totalorder %s21, %s22
      %p31 = scmp.eq.s32.totalorder %s16, 0
      %p32 = por %p30, %p31
      %p33 = scmp.ne.s32.totalorder %s21, %s22
      %p34 = scmp.eq.s32.totalorder %s17, 2
      %p35 = por %p33, %p34
      %p37 = scmp.ne.s32.totalorder %s22, %s36
      %p38 = scmp.eq.s32.totalorder %s17, 0
      %p39 = por %p37, %p38
      %s41 = sadd.s32 %s40, 1
      %p44 = scmp.eq.s32.totalorder %s11, 2
      %p45 = scmp.ne.s32.totalorder %s40, %s42
      %p46 = scmp.eq.s32.totalorder %s11, 0
      %p47 = por %p45, %p46
      %p48 = scmp.ne.s32.totalorder %s40, %s42
      %p49 = scmp.eq.s32.totalorder %s16, 2
      %p50 = por %p48, %p49
      %p51 = scmp.ne.s32.totalorder %s42, %s43
      %p52 = scmp.eq.s32.totalorder %s16, 0
      %p53 = por %p51, %p52
      %p54 = scmp.ne.s32.totalorder %s42, %s43
      %p55 = scmp.eq.s32.totalorder %s17, 2
      %p56 = por %p54, %p55
      %p58 = scmp.ne.s32.totalorder %s43, %s57
      %p59 = scmp.eq.s32.totalorder %s17, 0
      %p60 = por %p58, %p59
      %s61 = ssub.s32 %s11, %s18
      %p62 = scmp.eq.s32.totalorder %s61, 0
      %s64 = sadd.s32 %s63, 1
      %s65 = scalar_select %p62, %s63, %s64
      %p68 = pneg %p62
      %p69 = scmp.eq.s32.totalorder %s11, 2
      %p70 = por %p68, %p69
      %p71 = scmp.ne.s32.totalorder %s63, %s66
      %p72 = scmp.eq.s32.totalorder %s11, 0
      %p73 = por %p71, %p72
      %p74 = scmp.ne.s32.totalorder %s63, %s66
      %p75 = scmp.eq.s32.totalorder %s16, 2
      %p76 = por %p74, %p75
      %p77 = scmp.ne.s32.totalorder %s66, %s67
      %p78 = scmp.eq.s32.totalorder %s16, 0
      %p79 = por %p77, %p78
      %p80 = scmp.ne.s32.totalorder %s66, %s67
      %p81 = scmp.eq.s32.totalorder %s17, 2
      %p82 = por %p80, %p81
      %p84 = scmp.ne.s32.totalorder %s67, %s83
      %p85 = scmp.eq.s32.totalorder %s17, 0
      %p86 = por %p84, %p85
      %s87 = ssub.s32 %s11, %s18
      %p88 = scmp.eq.s32.totalorder %s87, 0
      %s90 = sadd.s32 %s89, 1
      %s91 = scalar_select %p88, %s89, %s90
      %p94 = pneg %p88
      %p95 = scmp.eq.s32.totalorder %s11, 2
      %p96 = por %p94, %p95
      %p97 = scmp.ne.s32.totalorder %s89, %s92
      %p98 = scmp.eq.s32.totalorder %s11, 0
      %p99 = por %p97, %p98
      %p100 = scmp.ne.s32.totalorder %s89, %s92
      %p101 = scmp.eq.s32.totalorder %s16, 2
      %p102 = por %p100, %p101
      %p103 = scmp.ne.s32.totalorder %s92, %s93
      %p104 = scmp.eq.s32.totalorder %s16, 0
      %p105 = por %p103, %p104
      %p106 = scmp.ne.s32.totalorder %s92, %s93
      %p107 = scmp.eq.s32.totalorder %s17, 2
      %p108 = por %p106, %p107
      %p110 = scmp.ne.s32.totalorder %s93, %s109
      %p111 = scmp.eq.s32.totalorder %s17, 0
      %p112 = por %p110, %p111
      %s114 = sadd.s32 %s113, 1
      %p117 = scmp.eq.s32.totalorder %s11, 2
      %p118 = scmp.ne.s32.totalorder %s113, %s115
      %p119 = scmp.eq.s32.totalorder %s11, 0
      %p120 = por %p118, %p119
      %p121 = scmp.ne.s32.totalorder %s113, %s115
      %p122 = scmp.eq.s32.totalorder %s16, 2
      %p123 = por %p121, %p122
      %p124 = scmp.ne.s32.totalorder %s115, %s116
      %p125 = scmp.eq.s32.totalorder %s16, 0
      %p126 = por %p124, %p125
      %p127 = scmp.ne.s32.totalorder %s115, %s116
      %p128 = scmp.eq.s32.totalorder %s17, 2
      %p129 = por %p127, %p128
      %p131 = scmp.ne.s32.totalorder %s116, %s130
      %p132 = scmp.eq.s32.totalorder %s17, 0
      %p133 = por %p131, %p132
      %p134 = scmp.le.s32.totalorder 1, %s11
      %p135 = scmp.lt.s32.totalorder %s11, 4
      %p136 = pnand %p134, %p135
      %p137 = pneg %p136
      // Predicated region
      $region9: #{tpu_custom_call.1} parent=5 // pred_check
        _
      $region10: #{tpu_custom_call.1} parent=5 // pred_check_branch
        %139 = sbr.rel (%p136) target = $region12
      $region11: #{tpu_custom_call.1} parent=5 // pred_region
        %s140 = ssub.s32 %s11, 1
        // Predicated region
        $region13: #{tpu_custom_call.1} parent=11 // pred_check
          %p141 = pneg %p32
        $region14: #{tpu_custom_call.1} parent=11 // pred_check_branch
          %143 = sbr.rel (%p141) target = $region16
        $region15: #{tpu_custom_call.1} parent=11 // pred_region
          _
        $region16: #{tpu_custom_call.1} parent=11 // pred_fallthru
          _
        // Predicated region
        $region17: #{tpu_custom_call.1} parent=11 // pred_check
          %p144 = pneg %p53
        $region18: #{tpu_custom_call.1} parent=11 // pred_check_branch
          %146 = sbr.rel (%p144) target = $region20
        $region19: #{tpu_custom_call.1} parent=11 // pred_region
          _
        $region20: #{tpu_custom_call.1} parent=11 // pred_fallthru
          _
      $region12: #{tpu_custom_call.1} parent=5 // pred_fallthru
        _
      %p147 = scmp.lt.s32.totalorder %s11, 3
      // Predicated region
      $region21: #{tpu_custom_call.1} parent=5 // pred_check
        %p148 = pneg %p147
      $region22: #{tpu_custom_call.1} parent=5 // pred_check_branch
        %150 = sbr.rel (%p148) target = $region24
      $region23: #{tpu_custom_call.1} parent=5 // pred_region
        // Predicated region
        $region25: #{tpu_custom_call.1} parent=23 // pred_check
          %p151 = pneg %p73
        $region26: #{tpu_custom_call.1} parent=23 // pred_check_branch
          %153 = sbr.rel (%p151) target = $region28
        $region27: #{tpu_custom_call.1} parent=23 // pred_region
          %s154 = smul.u32 16, %s11
          %p155 = scmp.lt.s32.totalorder %s154, 47
          %s156 = scalar_select %p155, %s154, 47
          %s157 = smul.addr %s156, 8
          %s158 = scalar_lea.vmem %s2, %s157
          %s159 = smul.u32 16, %s11
        $region28: #{tpu_custom_call.1} parent=23 // pred_fallthru
          _
        // Predicated region
        $region29: #{tpu_custom_call.1} parent=23 // pred_check
          %p160 = pneg %p99
        $region30: #{tpu_custom_call.1} parent=23 // pred_check_branch
          %162 = sbr.rel (%p160) target = $region32
        $region31: #{tpu_custom_call.1} parent=23 // pred_region
          %p163 = scmp.lt.s32.totalorder %s11, 2
          %s164 = scalar_select %p163, %s11, 2
          %s165 = smul.addr %s164, 8
          %s166 = scalar_lea.vmem %s3, %s165
        $region32: #{tpu_custom_call.1} parent=23 // pred_fallthru
          _
      $region24: #{tpu_custom_call.1} parent=5 // pred_fallthru
        _
      %p167 = scmp.le.s32.totalorder 1, %s11
      %p168 = scmp.lt.s32.totalorder %s11, 4
      %p169 = pnand %p167, %p168
      %p170 = pneg %p169
      // Predicated region
      $region33: #{tpu_custom_call.1} parent=5 // pred_check
        _
      $region34: #{tpu_custom_call.1} parent=5 // pred_check_branch
        %172 = sbr.rel (%p169) target = $region36
      $region35: #{tpu_custom_call.1} parent=5 // pred_region
        %s173 = ssub.s32 %s11, 1
        %p174 = pneg %p32
        %p175 = pneg %p29
        %p176 = pneg %p53
        %p177 = pneg %p50
        %s178 = smul.u32 16, %s16
        %p179 = scmp.lt.s32.totalorder %s178, 47
        %s180 = scalar_select %p179, %s178, 47
        %s181 = smul.addr %s180, 8
        %s182 = scalar_lea.vmem %s2, %s181
        %p183 = pneg %p79
        %p184 = pneg %p76
        %p185 = scmp.lt.s32.totalorder %s16, 2
        %s186 = scalar_select %p185, %s16, 2
        %s187 = smul.addr %s186, 8
        %s188 = scalar_lea.vmem %s3, %s187
        %p189 = pneg %p105
        %p190 = pneg %p102
        %p191 = pneg %p126
        %p192 = pneg %p123
        %s193 = smul.u32 16, %s16
        %p194 = scmp.lt.s32.totalorder %s193, 47
        %s195 = scalar_select %p194, %s193, 47
        %s196 = smul.addr %s195, 8
        %s197 = scalar_lea.vmem %s2, %s196
        %s198 = smul.u32 16, %s16
        %p199 = scmp.lt.s32.totalorder %s16, 2
        %s200 = scalar_select %p199, %s16, 2
        %s201 = smul.addr %s200, 8
        %s202 = scalar_lea.vmem %s3, %s201
        %p203 = scmp.eq.s32.totalorder %s16, 0
        // Predicated region
        $region37: #{tpu_custom_call.1} parent=35 // pred_check
          %p204 = pneg %p203
        $region38: #{tpu_custom_call.1} parent=35 // pred_check_branch
          %206 = sbr.rel (%p204) target = $region40
        $region39: #{tpu_custom_call.1} parent=35 // pred_region
          %207 = vst [vmem:[#allocation2] sm:$0xff] 0.0
        $region40: #{tpu_custom_call.1} parent=35 // pred_fallthru
          _
        %v208 = vld [vmem:[%s0] sm:$0xff]
        %v209 = vld [vmem:[%s197] sm:$0xff]
        %v210 = vld [vmem:[%s197 + $0x8] sm:$0xff]
        %v211 = vld [vmem:[%s197 + $0x10] sm:$0xff]
        %v212 = vld [vmem:[%s197 + $0x18] sm:$0xff]
        %v213 = vld [vmem:[%s197 + $0x20] sm:$0xff]
        %v214 = vld [vmem:[%s197 + $0x28] sm:$0xff]
        %v215 = vld [vmem:[%s197 + $0x30] sm:$0xff]
        %v216 = vld [vmem:[%s197 + $0x38] sm:$0xff]
        %v217 = vld [vmem:[%s197 + $0x40] sm:$0xff]
        %v218 = vld [vmem:[%s197 + $0x48] sm:$0xff]
        %v219 = vld [vmem:[%s197 + $0x50] sm:$0xff]
        %v220 = vld [vmem:[%s197 + $0x58] sm:$0xff]
        %v221 = vld [vmem:[%s197 + $0x60] sm:$0xff]
        %v222 = vld [vmem:[%s197 + $0x68] sm:$0xff]
        %v223 = vld [vmem:[%s197 + $0x70] sm:$0xff]
        %v224 = vld [vmem:[%s197 + $0x78] sm:$0xff]
        %vm225 = vcmask 261120
        %v227 = vsel %vm225, %v208, 0
        %v230 = vsel %vm225, %v209, 0
        %v233 = vsel %vm225, %v210, 0
        %v236 = vsel %vm225, %v211, 0
        %v239 = vsel %vm225, %v212, 0
        %v242 = vsel %vm225, %v213, 0
        %v245 = vsel %vm225, %v214, 0
        %v248 = vsel %vm225, %v215, 0
        %v251 = vsel %vm225, %v216, 0
        %v254 = vsel %vm225, %v217, 0
        %v257 = vsel %vm225, %v218, 0
        %v260 = vsel %vm225, %v219, 0
        %v263 = vsel %vm225, %v220, 0
        %v266 = vsel %vm225, %v221, 0
        %v269 = vsel %vm225, %v222, 0
        %v272 = vsel %vm225, %v223, 0
        %v275 = vsel %vm225, %v224, 0
        %277 = vmatprep.subr.mxu0 0.0
        %278 = vmatpush1.xpose.msra.mxu0 %v230
        %279 = vmatprep.subr.mxu0 0.0
        %280 = vmatpush1.xpose.msra.mxu0 %v233
        %281 = vmatprep.subr.mxu0 0.0
        %282 = vmatpush1.xpose.msra.mxu0 %v236
        %283 = vmatprep.subr.mxu0 0.0
        %284 = vmatpush1.xpose.msra.mxu0 %v239
        %285 = vmatprep.subr.mxu0 0.0
        %286 = vmatpush1.xpose.msra.mxu0 %v242
        %287 = vmatprep.subr.mxu0 0.0
        %288 = vmatpush1.xpose.msra.mxu0 %v245
        %289 = vmatprep.subr.mxu0 0.0
        %290 = vmatpush1.xpose.msra.mxu0 %v248
        %291 = vmatprep.subr.mxu0 0.0
        %292 = vmatpush1.xpose.msra.mxu0 %v251
        %293 = vmatprep.subr.mxu0 0.0
        %294 = vmatpush1.xpose.msra.mxu0 %v254
        %295 = vmatprep.subr.mxu0 0.0
        %296 = vmatpush1.xpose.msra.mxu0 %v257
        %297 = vmatprep.subr.mxu0 0.0
        %298 = vmatpush1.xpose.msra.mxu0 %v260
        %299 = vmatprep.subr.mxu0 0.0
        %300 = vmatpush1.xpose.msra.mxu0 %v263
        %301 = vmatprep.subr.mxu0 0.0
        %302 = vmatpush1.xpose.msra.mxu0 %v266
        %303 = vmatprep.subr.mxu0 0.0
        %304 = vmatpush1.xpose.msra.mxu0 %v269
        %305 = vmatprep.subr.mxu0 0.0
        %306 = vmatpush1.xpose.msra.mxu0 %v272
        %307 = vmatprep.subr.mxu0 0.0
        %308 = vmatpush1.xpose.msra.mxu0 %v275
        %309 = vmatprep.subr.mxu0 0.0
        %310 = vmatpush1.xpose.msra.mxu0 0.0
        %311 = vmatprep.subr.mxu0 0.0
        %312 = vmatpush1.xpose.msra.mxu0 0.0
        %313 = vmatprep.subr.mxu0 0.0
        %314 = vmatpush1.xpose.msra.mxu0 0.0
        %315 = vmatprep.subr.mxu0 0.0
        %316 = vmatpush1.xpose.msra.mxu0 0.0
        %317 = vmatprep.subr.mxu0 0.0
        %318 = vmatpush1.xpose.msra.mxu0 0.0
        %319 = vmatprep.subr.mxu0 0.0
        %320 = vmatpush1.xpose.msra.mxu0 0.0
        %321 = vmatprep.subr.mxu0 0.0
        %322 = vmatpush1.xpose.msra.mxu0 0.0
        %323 = vmatprep.subr.mxu0 0.0
        %324 = vmatpush1.xpose.msra.mxu0 0.0
        %325 = vmatprep.subr.mxu0 0.0
        %326 = vmatpush1.xpose.msra.mxu0 0.0
        %327 = vmatprep.subr.mxu0 0.0
        %328 = vmatpush1.xpose.msra.mxu0 0.0
        %329 = vmatprep.subr.mxu0 0.0
        %330 = vmatpush1.xpose.msra.mxu0 0.0
        %331 = vmatprep.subr.mxu0 0.0
        %332 = vmatpush1.xpose.msra.mxu0 0.0
        %333 = vmatprep.subr.mxu0 0.0
        %334 = vmatpush1.xpose.msra.mxu0 0.0
        %335 = vmatprep.subr.mxu0 0.0
        %336 = vmatpush1.xpose.msra.mxu0 0.0
        %337 = vmatprep.subr.mxu0 0.0
        %338 = vmatpush1.xpose.msra.mxu0 0.0
        %339 = vmatprep.subr.mxu0 0.0
        %340 = vmatpush1.xpose.msra.mxu0 0.0
        %341 = vmatprep.mubr.f32.mxu0 0.0
        %342 = vmatmul.mubr.f32.gmra.mrb[0].mxu0 %v227
        %v343 = vpop.f32.mrb[0].mxu0
        %v344 = vadd.f32 0.0, %v343
        %v345 = vpop.f32.mrb[0].mxu0
        %346 = vdwg.mxu0
        %v347 = vld [vmem:[#allocation2] sm:$0xff]
        %v348 = vld [vmem:[%s202] sm:$0xff]
        %v349 = vmul.f32 %v344, 1.442695
        %v350 = vpow.pop %v349
        %v351 = vmul.f32 %v348, %v350
        %v352 = vadd.f32 %v347, %v351
        %353 = vst [vmem:[#allocation2] sm:$0xff] %v352
        %p354 = scmp.eq.s32.totalorder %s16, 2
        // Predicated region
        $region41: #{tpu_custom_call.1} parent=35 // pred_check
          %p355 = pneg %p354
        $region42: #{tpu_custom_call.1} parent=35 // pred_check_branch
          %357 = sbr.rel (%p355) target = $region44
        $region43: #{tpu_custom_call.1} parent=35 // pred_region
          %v358 = vld [vmem:[%s0] sm:$0xff]
          %v359 = vld [vmem:[%s1] sm:$0xff]
          %v360 = vmul.f32 %v359, %v358
          %v361 = vsel %vm225, %v360, 0.0
          %362 = vadd.xlane.f32.xlu0 %v361
          %v363 = vpop.xlane.xlu0 %362
          %v364 = vld [vmem:[#allocation2] sm:$0xff]
          %365 = vadd.xlane.f32.xlu0 %v364
          %v366 = vpop.xlane.xlu0 %365
          %v367 = vlog2.pop %v366
          %v368 = vmul.f32 %v367, 0.6931472
          %vm369 = vcmask 7168
          %v370 = vsel %vm369, %v368, 0.0
          %371 = vadd.xlane.f32.xlu0 %v370
          %v372 = vpop.xlane.xlu0 %371
          %v373 = vrot.slane %v372, 4
          %v374 = vadd.f32 %v372, %v373
          %v375 = vrot.slane %v374, 2
          %v376 = vadd.f32 %v374, %v375
          %v377 = vrot.slane %v376, 1
          %v378 = vadd.f32 %v376, %v377
          %s379 = vtos %v378
          %v380 = vstv %s379
          %v381 = vsel %vm369, %v363, 0.0
          %382 = vadd.xlane.f32.xlu0 %v381
          %v383 = vpop.xlane.xlu0 %382
          %v384 = vrot.slane %v383, 4
          %v385 = vadd.f32 %v383, %v384
          %v386 = vrot.slane %v385, 2
          %v387 = vadd.f32 %v385, %v386
          %v388 = vrot.slane %v387, 1
          %v389 = vadd.f32 %v387, %v388
          %s390 = vtos %v389
          %v391 = vstv %s390
          %v392 = vsub.f32 %v380, %v391
          %v393 = vrcp.pop 8.0
          %v394 = vmul.f32 %v392, %v393
          %vm395 = vcmask 0
          %396 = vst.msk [vmem:[#allocation3] sm:$0x1] %vm395, %v394
        $region44: #{tpu_custom_call.1} parent=35 // pred_fallthru
          _
        // Predicated region
        $region45: #{tpu_custom_call.1} parent=35 // pred_check
          %p397 = pneg %p123
        $region46: #{tpu_custom_call.1} parent=35 // pred_check_branch
          %399 = sbr.rel (%p397) target = $region48
        $region47: #{tpu_custom_call.1} parent=35 // pred_region
          %s401 = ssub.s32 16, 16
          %402 = vsyncadd [#allocation4], %s401
          %s404 = sshll.u32 [#allocation3], 4
          %s405 = int_to_ptr.vmem [resolvable:$true] %s404
          %407 = dma.vmem_to_hbm [thread:$0]  %s405, 16, %s4, [#allocation4]
        $region48: #{tpu_custom_call.1} parent=35 // pred_fallthru
          _
        // Predicated region
        $region49: #{tpu_custom_call.1} parent=35 // pred_check
          %p408 = pneg %p123
        $region50: #{tpu_custom_call.1} parent=35 // pred_check_branch
          %410 = sbr.rel (%p408) target = $region52
        $region51: #{tpu_custom_call.1} parent=35 // pred_region
          %411 = dma.done [#allocation4], 16
        $region52: #{tpu_custom_call.1} parent=35 // pred_fallthru
          _
      $region36: #{tpu_custom_call.1} parent=5 // pred_fallthru
        _
      %p412 = scmp.le.s32.totalorder 2, %s11
      // Predicated region
      $region53: #{tpu_custom_call.1} parent=5 // pred_check
        %p413 = pneg %p412
      $region54: #{tpu_custom_call.1} parent=5 // pred_check_branch
        %415 = sbr.rel (%p413) target = $region56
      $region55: #{tpu_custom_call.1} parent=5 // pred_region
        %s416 = ssub.s32 %s11, 2
      $region56: #{tpu_custom_call.1} parent=5 // pred_fallthru
        _
    $region6: #{tpu_custom_call.1} parent=1 // loop_footer
      %s15 = sadd.s32 1, %s11
    $region7: #{tpu_custom_call.1} parent=1 // loop_footer_branch
      %10 = sbr.rel target = $region3
    $region8: #{tpu_custom_call.1} parent=1 // loop_exit
      _
    %417 = vsyncpa [#allocation4], 1
    %s418 = scalar_lea.sflag [#allocation4], 1
    %419 = vsyncpa %s418, 1

</llo_original>
